<compile_context>
chip_gen: v5e
topology: v5e:2x2
jax: 0.10.0
libtpu: 0.0.40
codegen_flags: <defaults>
</compile_context>

<pallas_src>
import functools

import jax
import jax.numpy as jnp
from jax import lax
from jax.experimental import pallas as pl
from jax.experimental.pallas import tpu as pltpu


def _round_up(x, m):
    return ((x + m - 1) // m) * m


def _vmem_limit_bytes():
    """Generation-aware scoped-VMEM limit (~3/4 of physical, capped at 96 MiB).

    128 MiB parts (v5e/v6e) get 96 MiB, 64 MiB parts (v7x) get 48 MiB, and if
    the query fails we fall back to the conservative 48 MiB that is safe on
    every generation.
    """
    try:
        cap = int(pltpu.get_tpu_info().vmem_capacity_bytes)
    except Exception:
        cap = 64 << 20
    if cap < (32 << 20):            # sanity clamp on weird reports
        cap = 64 << 20
    return min((cap * 3) // 4, 96 << 20)


def _choose_tiles(n, c, itemsize, vmem_limit):
    """Pick (TN, TC) so 2 logit inputs x 2 pipeline buffers fit the budget."""
    budget = vmem_limit // 2                      # bytes for y1/y2 tiles x 2 bufs
    rows_full_c = budget // (4 * c * itemsize)    # rows per tile if TC == C
    if rows_full_c >= n:
        return n, c                               # one batch block, full C
    if rows_full_c >= 8:
        return min(2048, (rows_full_c // 8) * 8), c   # batch-tiled, full C
    # Vocab-scale C: also tile the class (reduction) axis, TC multiple of 128.
    tc = min(_round_up(c, 128), 8192)
    while 4 * 8 * tc * itemsize > budget and tc > 128:
        tc //= 2
    tn_cap = max(8, (budget // (4 * tc * itemsize)) // 8 * 8)
    tn = n if n <= tn_cap else min(1024, tn_cap)
    return tn, tc


def _maybe_core_parallel(grid_i):
    """Return pltpu.CORE_PARALLEL for the batch axis on v7x-class chips.

    Only enabled when the chip actually has multiple TensorCores (detected
    via device_kind) and the batch grid splits evenly; otherwise None.
    """
    core_parallel = getattr(pltpu, "CORE_PARALLEL", None)
    if core_parallel is None or grid_i <= 1 or (grid_i % 2) != 0:
        return None
    try:
        kind = jax.devices()[0].device_kind.lower()
    except Exception:
        return None
    if ("v7" in kind) or ("tpu7" in kind):
        return core_parallel
    return None


def _dim_semantics(grid_i, n_axes):
    cp = _maybe_core_parallel(grid_i)
    if cp is not None:
        rest = (getattr(pltpu, "ARBITRARY", "arbitrary"),) * (n_axes - 1)
        return (cp,) + rest
    return ("parallel",) + ("arbitrary",) * (n_axes - 1)


# ---------------------------------------------------------------------------
# Fast path: the whole class axis fits in one tile (TC == C).  No scratch,
# no online-LSE rescaling, no narrow accumulator RMW — lse and the picked
# logit are computed in registers and written once.
# ---------------------------------------------------------------------------
def _ce_kernel_fast(y1_ref, y2_ref, lab_ref, out_ref):
    tn, tc = y1_ref.shape
    labels = lab_ref[...]                                        # [TN, 1] int32
    onehot = lax.broadcasted_iota(jnp.int32, (tn, tc), 1) == labels

    def ce(logits):
        x = logits.astype(jnp.float32)
        m = jnp.max(x, axis=-1, keepdims=True)
        s = jnp.sum(jnp.exp(x - m), axis=-1, keepdims=True)
        p = jnp.sum(jnp.where(onehot, x, 0.0), axis=-1, keepdims=True)
        return m + jnp.log(s) - p                                # [TN, 1]

    # Output store happens once per batch tile; cost is negligible.
    out_ref[:, 0:1] = ce(y1_ref[...]).astype(out_ref.dtype)
    out_ref[:, 1:2] = ce(y2_ref[...]).astype(out_ref.dtype)


# ---------------------------------------------------------------------------
# Vocab-scale path: online logsumexp over class tiles (reduction axis last).
# ---------------------------------------------------------------------------
def _ce_kernel_tiled(y1_ref, y2_ref, lab_ref, out_ref,
                     m1, s1, p1, m2, s2, p2, *, num_classes):
    j = pl.program_id(1)
    nj = pl.num_programs(1)
    tn, tc = y1_ref.shape

    @pl.when(j == 0)
    def _init():
        m1[...] = jnp.full((tn, 1), -jnp.inf, jnp.float32)
        m2[...] = jnp.full((tn, 1), -jnp.inf, jnp.float32)
        s1[...] = jnp.zeros((tn, 1), jnp.float32)
        s2[...] = jnp.zeros((tn, 1), jnp.float32)
        p1[...] = jnp.zeros((tn, 1), jnp.float32)
        p2[...] = jnp.zeros((tn, 1), jnp.float32)

    # Shift the label instead of the iota: one (TN, 1) subtract instead of a
    # full-tile int add per class tile.
    iota = lax.broadcasted_iota(jnp.int32, (tn, tc), 1)
    local_lab = lab_ref[...] - j * tc                            # [TN, 1]
    onehot = iota == local_lab                                   # [TN, TC]

    def accumulate(logits, m_ref, s_ref, p_ref, valid):
        # TODO(synk): optional bf16 exp on v6e/v7x (EUP supports bf16) could
        # halve EUP pushes; kept in f32 pending numerics validation.
        x = logits.astype(jnp.float32)
        if valid is not None:
            x = jnp.where(valid, x, -jnp.inf)
        m_old = m_ref[...]
        m_new = jnp.maximum(m_old, jnp.max(x, axis=-1, keepdims=True))
        scale = jnp.exp(m_old - m_new)
        s_ref[...] = (scale * s_ref[...]
                      + jnp.sum(jnp.exp(x - m_new), axis=-1, keepdims=True))
        p_ref[...] = (p_ref[...]
                      + jnp.sum(jnp.where(onehot, x, 0.0), axis=-1,
                                keepdims=True))
        m_ref[...] = m_new

    ragged_c = (num_classes % tc) != 0
    if ragged_c:
        # Only the final class tile has an out-of-range tail; keep the -inf
        # masking off the hot (non-final) tiles via a runtime branch.
        @pl.when(j != nj - 1)
        def _hot():
            accumulate(y1_ref[...], m1, s1, p1, None)
            accumulate(y2_ref[...], m2, s2, p2, None)

        @pl.when(j == nj - 1)
        def _tail():
            valid = iota < (num_classes - j * tc)
            accumulate(y1_ref[...], m1, s1, p1, valid)
            accumulate(y2_ref[...], m2, s2, p2, valid)
    else:
        accumulate(y1_ref[...], m1, s1, p1, None)
        accumulate(y2_ref[...], m2, s2, p2, None)

    @pl.when(j == nj - 1)
    def _finalize():
        out_ref[:, 0:1] = (m1[...] + jnp.log(s1[...])
                           - p1[...]).astype(out_ref.dtype)
        out_ref[:, 1:2] = (m2[...] + jnp.log(s2[...])
                           - p2[...]).astype(out_ref.dtype)


def per_sample_cross_entropy(y_1, y_2, y_noise):
    """Returns (loss_1, loss_2), each [N] float32, via a single Pallas call."""
    n, c = y_1.shape
    itemsize = jnp.dtype(y_1.dtype).itemsize
    vmem_limit = _vmem_limit_bytes()
    tn, tc = _choose_tiles(n, c, itemsize, vmem_limit)
    labels2d = y_noise.astype(jnp.int32).reshape(n, 1)
    grid_i = pl.cdiv(n, tn)

    if tc == c:
        # Single-class-tile fast path (the common, moderate-C configuration).
        kernel = _ce_kernel_fast
        grid = (grid_i,)
        in_specs = [
            pl.BlockSpec((tn, tc), lambda i: (i, 0)),   # y_1 logits
            pl.BlockSpec((tn, tc), lambda i: (i, 0)),   # y_2 logits
            pl.BlockSpec((tn, 1), lambda i: (i, 0)),    # labels
        ]
        out_specs = pl.BlockSpec((tn, 2), lambda i: (i, 0))
        scratch_shapes = []
    else:
        kernel = functools.partial(_ce_kernel_tiled, num_classes=c)
        grid = (grid_i, pl.cdiv(c, tc))
        in_specs = [
            pl.BlockSpec((tn, tc), lambda i, j: (i, j)),   # y_1 logits
            pl.BlockSpec((tn, tc), lambda i, j: (i, j)),   # y_2 logits
            pl.BlockSpec((tn, 1), lambda i, j: (i, 0)),    # labels
        ]
        out_specs = pl.BlockSpec((tn, 2), lambda i, j: (i, 0))
        scratch_shapes = [pltpu.VMEM((tn, 1), jnp.float32)] * 6

    losses = pl.pallas_call(
        kernel,
        out_shape=jax.ShapeDtypeStruct((n, 2), jnp.float32),
        grid_spec=pltpu.PrefetchScalarGridSpec(
            num_scalar_prefetch=0,
            grid=grid,
            in_specs=in_specs,
            out_specs=out_specs,
            scratch_shapes=scratch_shapes,
        ),
        compiler_params=pltpu.CompilerParams(
            # Batch tiles are independent; on v7x (when the batch grid splits
            # evenly) this is CORE_PARALLEL so both TensorCores are used.
            dimension_semantics=_dim_semantics(grid_i, len(grid)),
            vmem_limit_bytes=vmem_limit,
        ),
        cost_estimate=pl.CostEstimate(
            flops=8 * n * c,
            transcendentals=2 * n * c,
            bytes_accessed=2 * n * c * itemsize + n * 4 + n * 2 * 4,
        ),
    )(y_1, y_2, labels2d)   # logits passed in native dtype, no wrapper upcast

    return losses[:, 0], losses[:, 1]


def ct_loss(y_1, y_2, y_noise, forget_rate, ind, noise_or_not):
    """JAX/Pallas equivalent of CTLoss.forward."""
    # Hot path: per-sample CE losses for both networks (Pallas kernel).
    loss_1, loss_2 = per_sample_cross_entropy(y_1, y_2, y_noise)

    # Sorting (small-N glue, same semantics as np.argsort ascending).
    ind_1_sorted = jnp.argsort(loss_1)
    ind_2_sorted = jnp.argsort(loss_2)

    remember_rate = 1.0 - forget_rate
    num_remember = int(remember_rate * loss_1.shape[0])
    # TODO(synk): forget_rate must be a Python float; forget_rate == 1.0 gives
    # num_remember == 0 and divides by zero, matching the torch reference.

    ind_1_update = ind_1_sorted[:num_remember]
    ind_2_update = ind_2_sorted[:num_remember]
    ind_noisy_1 = ind_1_sorted[num_remember:]
    ind_noisy_2 = ind_2_sorted[num_remember:]

    noise_or_not = noise_or_not.astype(jnp.float32)
    pure_ratio_1 = jnp.sum(noise_or_not[ind[ind_1_update]]) / float(num_remember)
    pure_ratio_2 = jnp.sum(noise_or_not[ind[ind_2_update]]) / float(num_remember)

    # F.cross_entropy(y_1[idx], y_noise[idx]) with mean reduction
    # == mean of the per-sample CE losses at those indices.
    loss_1_update = jnp.mean(loss_1[ind_2_update])
    loss_2_update = jnp.mean(loss_2[ind_1_update])

    return (loss_1_update, loss_2_update, pure_ratio_1, pure_ratio_2,
            ind_1_update, ind_2_update, ind_noisy_1, ind_noisy_2)


if __name__ == "__main__":
    # Small deterministic example: batch N=8 samples, C=32 classes,
    # dataset of DS=16 examples for the noise_or_not bookkeeping.
    N, C, DS = 8, 32, 16
    key = jax.random.PRNGKey(0)
    k1, k2, k3, k4, k5 = jax.random.split(key, 5)

    y_1 = jax.random.normal(k1, (N, C), jnp.float32)            # logits net 1
    y_2 = jax.random.normal(k2, (N, C), jnp.float32)            # logits net 2
    y_noise = jax.random.randint(k3, (N,), 0, C, jnp.int32)     # noisy labels
    ind = jax.random.permutation(k4, DS)[:N].astype(jnp.int32)  # dataset indices
    noise_or_not = (jax.random.uniform(k5, (DS,)) > 0.3).astype(jnp.float32)
    forget_rate = 0.25

    outs = ct_loss(y_1, y_2, y_noise, forget_rate, ind, noise_or_not)
    jax.block_until_ready(outs)
    print("KERNEL_OK")
</pallas_src>

<mosaic_0001>
module attributes {stable_mosaic.version = 11 : i64} {
  func.func @_ce_kernel_fast(%arg0: i32, %arg1: memref<8x32xf32, #tpu.memory_space<vmem>>, %arg2: memref<8x32xf32, #tpu.memory_space<vmem>>, %arg3: memref<8x1xi32, #tpu.memory_space<vmem>>, %arg4: memref<8x2xf32, #tpu.memory_space<vmem>>) attributes {dimension_semantics = [#tpu.dimension_semantics<parallel>], iteration_bounds = array<i64: 1>, scalar_prefetch = 0 : i64, scratch_operands = 0 : i64, tpu.core_type = #tpu.core_type<tc>, window_params = [{transform_indices = @transform_0, window_bounds = array<i64: 8, 32>}, {transform_indices = @transform_1, window_bounds = array<i64: 8, 32>}, {transform_indices = @transform_2, window_bounds = array<i64: 8, 1>}, {transform_indices = @transform_3, window_bounds = array<i64: 8, 2>}]} {
    %c0 = arith.constant 0 : index
    %c0_0 = arith.constant 0 : index
    %0 = vector.load %arg3[%c0, %c0_0] : memref<8x1xi32, #tpu.memory_space<vmem>>, vector<8x1xi32>
    %1 = tpu.iota {dimensions = array<i32: 1>} : vector<8x32xi32>
    %2 = vector.broadcast %0 : vector<8x1xi32> to vector<8x32xi32>
    %3 = arith.cmpi eq, %1, %2 : vector<8x32xi32>
    %c0_1 = arith.constant 0 : index
    %c0_2 = arith.constant 0 : index
    %4 = vector.load %arg1[%c0_1, %c0_2] : memref<8x32xf32, #tpu.memory_space<vmem>>, vector<8x32xf32>
    %cst = arith.constant dense<0xFF800000> : vector<8xf32>
    %5 = vector.multi_reduction <maximumf>, %4, %cst [1] : vector<8x32xf32> to vector<8xf32>
    %6 = vector.shape_cast %5 : vector<8xf32> to vector<8x1xf32>
    %7 = vector.broadcast %6 : vector<8x1xf32> to vector<8x32xf32>
    %8 = arith.subf %4, %7 : vector<8x32xf32>
    %9 = math.exp %8 : vector<8x32xf32>
    %cst_3 = arith.constant dense<0.000000e+00> : vector<8xf32>
    %10 = vector.multi_reduction <add>, %9, %cst_3 [1] : vector<8x32xf32> to vector<8xf32>
    %11 = vector.shape_cast %10 : vector<8xf32> to vector<8x1xf32>
    %cst_4 = arith.constant 0.000000e+00 : f32
    %12 = vector.broadcast %cst_4 : f32 to vector<8x32xf32>
    %13 = arith.select %3, %4, %12 : vector<8x32xi1>, vector<8x32xf32>
    %cst_5 = arith.constant dense<0.000000e+00> : vector<8xf32>
    %14 = vector.multi_reduction <add>, %13, %cst_5 [1] : vector<8x32xf32> to vector<8xf32>
    %15 = vector.shape_cast %14 : vector<8xf32> to vector<8x1xf32>
    %16 = math.log %11 : vector<8x1xf32>
    %17 = arith.addf %6, %16 : vector<8x1xf32>
    %18 = arith.subf %17, %15 : vector<8x1xf32>
    %c0_6 = arith.constant 0 : index
    %c0_7 = arith.constant 0 : index
    %19 = vector.load %arg4[%c0_6, %c0_7] : memref<8x2xf32, #tpu.memory_space<vmem>>, vector<8x1xf32>
    tpu.vector_store %arg4[%c0_6, %c0_7], %18 {strides = array<i32>} : memref<8x2xf32, #tpu.memory_space<vmem>>, vector<8x1xf32>,
    %c0_8 = arith.constant 0 : index
    %c0_9 = arith.constant 0 : index
    %20 = vector.load %arg2[%c0_8, %c0_9] : memref<8x32xf32, #tpu.memory_space<vmem>>, vector<8x32xf32>
    %cst_10 = arith.constant dense<0xFF800000> : vector<8xf32>
    %21 = vector.multi_reduction <maximumf>, %20, %cst_10 [1] : vector<8x32xf32> to vector<8xf32>
    %22 = vector.shape_cast %21 : vector<8xf32> to vector<8x1xf32>
    %23 = vector.broadcast %22 : vector<8x1xf32> to vector<8x32xf32>
    %24 = arith.subf %20, %23 : vector<8x32xf32>
    %25 = math.exp %24 : vector<8x32xf32>
    %cst_11 = arith.constant dense<0.000000e+00> : vector<8xf32>
    %26 = vector.multi_reduction <add>, %25, %cst_11 [1] : vector<8x32xf32> to vector<8xf32>
    %27 = vector.shape_cast %26 : vector<8xf32> to vector<8x1xf32>
    %cst_12 = arith.constant 0.000000e+00 : f32
    %28 = vector.broadcast %cst_12 : f32 to vector<8x32xf32>
    %29 = arith.select %3, %20, %28 : vector<8x32xi1>, vector<8x32xf32>
    %cst_13 = arith.constant dense<0.000000e+00> : vector<8xf32>
    %30 = vector.multi_reduction <add>, %29, %cst_13 [1] : vector<8x32xf32> to vector<8xf32>
    %31 = vector.shape_cast %30 : vector<8xf32> to vector<8x1xf32>
    %32 = math.log %27 : vector<8x1xf32>
    %33 = arith.addf %22, %32 : vector<8x1xf32>
    %34 = arith.subf %33, %31 : vector<8x1xf32>
    %c0_14 = arith.constant 0 : index
    %c1 = arith.constant 1 : index
    %35 = vector.load %arg4[%c0_14, %c1] : memref<8x2xf32, #tpu.memory_space<vmem>>, vector<8x1xf32>
    tpu.vector_store %arg4[%c0_14, %c1], %34 {strides = array<i32>} : memref<8x2xf32, #tpu.memory_space<vmem>>, vector<8x1xf32>,
    return
  }
  func.func @transform_0(%arg0: i32) -> (i32, i32) {
    %c0_i32 = arith.constant 0 : i32
    %c0_i32_0 = arith.constant 0 : i32
    return %arg0, %c0_i32 : i32, i32
  }
  func.func @transform_1(%arg0: i32) -> (i32, i32) {
    %c0_i32 = arith.constant 0 : i32
    %c0_i32_0 = arith.constant 0 : i32
    return %arg0, %c0_i32 : i32, i32
  }
  func.func @transform_2(%arg0: i32) -> (i32, i32) {
    %c0_i32 = arith.constant 0 : i32
    %c0_i32_0 = arith.constant 0 : i32
    return %arg0, %c0_i32 : i32, i32
  }
  func.func @transform_3(%arg0: i32) -> (i32, i32) {
    %c0_i32 = arith.constant 0 : i32
    %c0_i32_0 = arith.constant 0 : i32
    return %arg0, %c0_i32 : i32, i32
  }
}

</mosaic_0001>

<llo_original>
// kernel: tpu_custom_call.1
$region0: #{tpu_custom_call.1}
  #allocation0 [shape = 'u32[]', space=smem, size = 0x4, offset = 0x4, fixed_abs, tag = 'smem constant byte address 0x4 - core index']
  #allocation1 [shape = 'u32[72,128]{1,0:T(1,128)}', space=vmem, size = 0x9000, scoped, tag = 'internal scratch']
  %s0 = inlined_call_operand.vmem [shape: f32[8,32], index: 0, kind: input, shape index: {}]
  %s1 = inlined_call_operand.hbm [shape: f32[8,32], index: 1, kind: input, shape index: {}]
  %s2 = inlined_call_operand.vmem [shape: s32[8,1], index: 2, kind: input, shape index: {}]
  %s3 = inlined_call_operand.vmem [shape: f32[8,2], index: 3, kind: output, shape index: {}]
  %s4 = sld [smem:[#allocation0]]
  $region26: #{tpu_custom_call.1} parent=0
    _
  %s6 = ssub.s32 1, %s4
  %s7 = scalar_select 0, %s6, %s4
  $region1: #{tpu_custom_call.1} parent=0
    #allocation2 [shape = 'u8[4096]{0}', space=vmem, size = 0x1000, scoped, tag = 'input window, operand 1, single buffered']
    #allocation3 [shape = 's32[1]{0}', space=sflag, size = 0x4, scoped, tag = 'scoped memory for tpu_custom_call.1']
    %8 = vsyncpa [#allocation3], 0
    // Predicated region
    $region2: #{tpu_custom_call.1} parent=1 // pred_check
      _
    $region3: #{tpu_custom_call.1} parent=1 // pred_check_branch
      %10 = sbr.rel (0) target = $region5
    $region4: #{tpu_custom_call.1} parent=1 // pred_region
      _
    $region5: #{tpu_custom_call.1} parent=1 // pred_fallthru
      _
    // Predicated region
    $region6: #{tpu_custom_call.1} parent=1 // pred_check
      _
    $region7: #{tpu_custom_call.1} parent=1 // pred_check_branch
      %12 = sbr.rel (0) target = $region9
    $region8: #{tpu_custom_call.1} parent=1 // pred_region
      %14 = vsyncadd [#allocation3], 0
      %s16 = sshll.u32 %s1, 4
      %s17 = int_to_ptr.hbm [resolvable:$true] %s16
      %s18 = sshll.u32 [#allocation2], 4
      %s19 = int_to_ptr.vmem [resolvable:$true] %s18
      %21 = dma.hbm_to_vmem [thread:$0]  %s17, 128, %s19, [#allocation3]
    $region9: #{tpu_custom_call.1} parent=1 // pred_fallthru
      _
    // Predicated region
    $region10: #{tpu_custom_call.1} parent=1 // pred_check
      _
    $region11: #{tpu_custom_call.1} parent=1 // pred_check_branch
      %23 = sbr.rel (0) target = $region13
    $region12: #{tpu_custom_call.1} parent=1 // pred_region
      _
    $region13: #{tpu_custom_call.1} parent=1 // pred_fallthru
      _
    // Predicated region
    $region14: #{tpu_custom_call.1} parent=1 // pred_check
      _
    $region15: #{tpu_custom_call.1} parent=1 // pred_check_branch
      %25 = sbr.rel (0) target = $region17
    $region16: #{tpu_custom_call.1} parent=1 // pred_region
      %27 = dma.done [#allocation3], 128
    $region17: #{tpu_custom_call.1} parent=1 // pred_fallthru
      _
    %v28 = vld [vmem:[%s2] sm:$0xff]
    %v29 = vlaneseq
    %v30 = vand.u32 %v29, 127
    %31 = vset.pattern.permute.xlu0 0
    %32 = vperm.xlu0 %31, %v28
    %v33 = vpop.permute.xlu0 %32
    %vm34 = vcmp.eq.s32.totalorder %v30, %v33
    %v35 = vld [vmem:[%s0] sm:$0xff]
    %vm36 = vcmask 261120
    %v37 = vsel %vm36, %v35, -inf
    %38 = vmax.xlane.f32.xlu0 %v37
    %v39 = vpop.xlane.xlu0 %38
    %v40 = vsub.f32 %v35, %v39
    %v41 = vmul.f32 %v40, 1.442695
    %v42 = vpow.pop %v41
    %v43 = vsel %vm36, %v42, 0.0
    %44 = vadd.xlane.f32.xlu0 %v43
    %v45 = vpop.xlane.xlu0 %44
    %v46 = vsel %vm34, %v35, 0.0
    %v47 = vsel %vm36, %v46, 0.0
    %48 = vadd.xlane.f32.xlu0 %v47
    %v49 = vpop.xlane.xlu0 %48
    %v50 = vlog2.pop %v45
    %v51 = vmul.f32 %v50, 0.6931472
    %v52 = vadd.f32 %v39, %v51
    %v53 = vsub.f32 %v52, %v49
    %vm54 = vcmask 7168
    %55 = vst.msk [vmem:[%s3] sm:$0xff] %vm54, %v53
    %v56 = vld [vmem:[#allocation2] sm:$0xff]
    %v57 = vsel %vm36, %v56, -inf
    %58 = vmax.xlane.f32.xlu0 %v57
    %v59 = vpop.xlane.xlu0 %58
    %v60 = vsub.f32 %v56, %v59
    %v61 = vmul.f32 %v60, 1.442695
    %v62 = vpow.pop %v61
    %v63 = vsel %vm36, %v62, 0.0
    %64 = vadd.xlane.f32.xlu0 %v63
    %v65 = vpop.xlane.xlu0 %64
    %v66 = vsel %vm34, %v56, 0.0
    %v67 = vsel %vm36, %v66, 0.0
    %68 = vadd.xlane.f32.xlu0 %v67
    %v69 = vpop.xlane.xlu0 %68
    %v70 = vlog2.pop %v65
    %v71 = vmul.f32 %v70, 0.6931472
    %v72 = vadd.f32 %v59, %v71
    %v73 = vsub.f32 %v72, %v69
    %vm74 = vcmask 15368
    %75 = vst.msk [vmem:[%s3] sm:$0xff] %vm74, %v73
    // Predicated region
    $region18: #{tpu_custom_call.1} parent=1 // pred_check
      _
    $region19: #{tpu_custom_call.1} parent=1 // pred_check_branch
      %77 = sbr.rel (0) target = $region21
    $region20: #{tpu_custom_call.1} parent=1 // pred_region
      _
    $region21: #{tpu_custom_call.1} parent=1 // pred_fallthru
      _
    // Predicated region
    $region22: #{tpu_custom_call.1} parent=1 // pred_check
      _
    $region23: #{tpu_custom_call.1} parent=1 // pred_check_branch
      %79 = sbr.rel (0) target = $region25
    $region24: #{tpu_custom_call.1} parent=1 // pred_region
      _
    $region25: #{tpu_custom_call.1} parent=1 // pred_fallthru
      _
    %80 = vsyncpa [#allocation3], 1

</llo_original>
